<compile_context>
chip_gen: v5e
topology: v5e:2x2
jax: 0.10.0
libtpu: 0.0.40
codegen_flags: <defaults>
</compile_context>

<pallas_src>
import functools
import math

import jax
import jax.numpy as jnp
from jax import lax
from jax.experimental import pallas as pl
from jax.experimental.pallas import tpu as pltpu

EPS = 1e-07                    # torch.clamp(softmax, min=eps, max=1.0)
OH_MIN = 1e-04                 # torch.clamp(one_hot, min=0.0001, max=1.0)
NEG_FILL = -1e30               # mask for dropped logit column(s); exp -> 0 exactly
RCE_COEF = -math.log(OH_MIN)   # rce = RCE_COEF * (sum_j p_j - p_true)


def _round_up(x, m):
    return (x + m - 1) // m * m


def _sce_loss_kernel(logits_ref, labels_ref, out_ref, *,
                     n_total, num_classes, tile_n, rows_per_split, a, b):
    s = pl.program_id(0)       # batch split (parallel -> maps to 2 TCs on v7x)
    t = pl.program_id(1)       # tile within split (reduction axis, last)

    # Output block index depends only on s -> resident accumulator across t.
    @pl.when(t == 0)
    def _():
        out_ref[...] = jnp.zeros_like(out_ref)

    x = logits_ref[...].astype(jnp.float32)              # (tile_n, C+1)
    labels = labels_ref[...]                              # (tile_n, 1) int32
    tn, c_full = x.shape

    col = lax.broadcasted_iota(jnp.int32, (1, c_full), 1)
    onehot = col == labels                                 # (tile_n, C+1) bool
    # Drop the last logit column(s) in-kernel (no wrapper HBM copy): mask to a
    # huge negative BEFORE any row reduction so exp underflows to exactly 0.
    x = jnp.where(col < num_classes, x, NEG_FILL)

    # ----- cross entropy: logsumexp - logit_true (single exp pass) -----
    m = jnp.max(x, axis=1, keepdims=True)
    e = jnp.exp(x - m)                                     # reused for softmax below
    sumexp = jnp.sum(e, axis=1, keepdims=True)
    logit_true = jnp.sum(jnp.where(onehot, x, 0.0), axis=1, keepdims=True)
    ce = m + jnp.log(sumexp) - logit_true                  # (tile_n, 1) per-sample CE

    # ----- reverse CE: -log(1e-4) * (sum_j clamp(p_j) - clamp(p_true)) -----
    inv = 1.0 / sumexp            # per-row exact reciprocal (cheap: tile_n elems);
                                  # exact -> p <= 1, so the upper clamp never binds.
    p = jnp.maximum(e * inv, EPS)                          # lower clamp only
    # Masked column(s) have e == 0 exactly -> p == EPS there; remove their
    # contribution with a static scalar instead of a per-element select.
    pad_correction = float(c_full - num_classes) * EPS
    p_sum = jnp.sum(p, axis=1, keepdims=True) - pad_correction
    p_true = jnp.maximum(jnp.exp(logit_true - m) * inv, EPS)   # from row scalars
    rce = RCE_COEF * (p_sum - p_true)                      # (tile_n, 1)

    # ----- mask rows past the true batch (partial / duplicated edge tiles).
    # where-based select (NOT a multiply) so garbage OOB rows cannot NaN the sum.
    row = lax.broadcasted_iota(jnp.int32, (tn, 1), 0)
    row_global = s * rows_per_split + t * tile_n + row
    contrib = jnp.where(row_global < n_total, a * ce + b * rce, 0.0)

    out_ref[...] += jnp.sum(contrib)     # mean's /N applied once in the wrapper


def sce_loss(pred, labels, *, num_classes, a=1.0, b=1.0, tile_n=None):
    """pred: (N, num_classes + 1) float, labels: (N,) int.  Returns scalar f32."""
    n, c_full = pred.shape
    assert c_full == num_classes + 1, "pred last dim must be num_classes + 1"

    # Stream pred as-is (no slice / pad copy in HBM). Only the tiny label
    # vector is reshaped to (N, 1) for a 2-D VMEM layout.
    labels2d = labels.astype(jnp.int32).reshape(n, 1)

    # Tile sizing by bytes: ~4 MiB (1M f32 elems) per full-width tile in its
    # lane-padded VMEM layout.  Double-buffered inputs + ~5x f32 intermediates
    # then stay well under the 48 MiB limit (safe for v7x's 64 MiB/TC, plenty
    # of physical headroom on v5e/v6e), while HBM DMAs stay in the 1-4 MiB
    # range that reaches ~85% of roofline.
    c_lane = _round_up(c_full, 128)        # VMEM rows are lane-padded to 128
    if tile_n is None:
        tile_n = (1 << 20) // c_lane // 8 * 8
    else:
        tile_n = _round_up(int(tile_n), 8)
    tile_n = max(8, min(tile_n, _round_up(n, 8)))

    tiles_total = pl.cdiv(n, tile_n)
    num_splits = 2 if tiles_total >= 2 else 1    # shard batch across v7x's 2 TCs
    tiles_per_split = pl.cdiv(tiles_total, num_splits)
    rows_per_split = tiles_per_split * tile_n
    last_block = tiles_total - 1

    # Clamp block indices so edge tiles of an uneven split re-read the last
    # valid block (their rows are masked in-kernel) instead of DMA-ing OOB.
    def row_map(s, t):
        return (jnp.minimum(s * tiles_per_split + t, last_block), 0)

    kernel = functools.partial(
        _sce_loss_kernel,
        n_total=n, num_classes=num_classes, tile_n=tile_n,
        rows_per_split=rows_per_split, a=float(a), b=float(b))

    partials = pl.pallas_call(
        kernel,
        out_shape=jax.ShapeDtypeStruct((num_splits, 1, 1), jnp.float32),
        grid=(num_splits, tiles_per_split),
        in_specs=[
            pl.BlockSpec((tile_n, c_full), row_map),   # full-width rows ->
            pl.BlockSpec((tile_n, 1), row_map),        # one contiguous DMA per tile
        ],
        out_specs=pl.BlockSpec((1, 1, 1), lambda s, t: (s, 0, 0)),
        compiler_params=pltpu.CompilerParams(
            dimension_semantics=("parallel", "arbitrary"),
            vmem_limit_bytes=48 * 1024 * 1024,
        ),
    )(pred, labels2d)

    return jnp.sum(partials) / jnp.float32(n)


def _sce_loss_ref(pred, labels, *, num_classes, a=1.0, b=1.0):
    """Pure-JAX reference mirroring the PyTorch module."""
    logits = pred[..., :-1].astype(jnp.float32)
    oh = jax.nn.one_hot(labels, num_classes, dtype=jnp.float32)
    logp = jax.nn.log_softmax(logits, axis=1)
    ce = -jnp.mean(jnp.sum(oh * logp, axis=1))
    p = jnp.clip(jax.nn.softmax(logits, axis=1), EPS, 1.0)
    oh_c = jnp.clip(oh, OH_MIN, 1.0)
    rce = -jnp.sum(p * jnp.log(oh_c), axis=1)
    return a * ce + b * jnp.mean(rce)


if __name__ == "__main__":
    key = jax.random.PRNGKey(0)
    k1, k2, k3, k4, k5, k6 = jax.random.split(key, 6)

    # Case 1: small shapes consistent with the module's forward
    # (N=8 samples, num_classes=32 -> 33 logit columns, last dropped).
    N1, C1 = 8, 32
    pred1 = jax.random.normal(k1, (N1, C1 + 1), dtype=jnp.float32)
    lab1 = jax.random.randint(k2, (N1,), 0, C1, dtype=jnp.int32)
    loss1 = jax.block_until_ready(sce_loss(pred1, lab1, num_classes=C1))
    ref1 = _sce_loss_ref(pred1, lab1, num_classes=C1)
    assert jnp.allclose(loss1, ref1, rtol=1e-5, atol=1e-5), (loss1, ref1)

    # Case 2: uneven 2-way split + partial final block + duplicate edge block
    # (N=23 rows not a multiple of 8, tile_n=8 -> 3 tiles over a (2,2) grid).
    N2, C2 = 23, 40
    pred2 = jax.random.normal(k3, (N2, C2 + 1), dtype=jnp.float32)
    lab2 = jax.random.randint(k4, (N2,), 0, C2, dtype=jnp.int32)
    loss2 = jax.block_until_ready(
        sce_loss(pred2, lab2, num_classes=C2, a=0.5, b=2.0, tile_n=8))
    ref2 = _sce_loss_ref(pred2, lab2, num_classes=C2, a=0.5, b=2.0)
    assert jnp.allclose(loss2, ref2, rtol=1e-5, atol=1e-5), (loss2, ref2)

    # Case 3: bf16 logits streamed as-is (upcast to f32 inside the kernel).
    N3, C3 = 16, 100
    pred3 = jax.random.normal(k5, (N3, C3 + 1), dtype=jnp.bfloat16)
    lab3 = jax.random.randint(k6, (N3,), 0, C3, dtype=jnp.int32)
    loss3 = jax.block_until_ready(
        sce_loss(pred3, lab3, num_classes=C3, a=2.0, b=0.25, tile_n=8))
    ref3 = _sce_loss_ref(pred3, lab3, num_classes=C3, a=2.0, b=0.25)
    assert jnp.allclose(loss3, ref3, rtol=1e-4, atol=1e-4), (loss3, ref3)

    print("KERNEL_OK")
</pallas_src>

<mosaic_0001>
module attributes {stable_mosaic.version = 11 : i64} {
  func.func @_sce_loss_kernel(%arg0: i32, %arg1: i32, %arg2: memref<8x33xf32, #tpu.memory_space<vmem>>, %arg3: memref<8x1xi32, #tpu.memory_space<vmem>>, %arg4: memref<1x1x1xf32, #tpu.memory_space<vmem>>) attributes {dimension_semantics = [#tpu.dimension_semantics<parallel>, #tpu.dimension_semantics<arbitrary>], iteration_bounds = array<i64: 1, 1>, scalar_prefetch = 0 : i64, scratch_operands = 0 : i64, tpu.core_type = #tpu.core_type<tc>, window_params = [{transform_indices = @transform_0, window_bounds = array<i64: 8, 33>}, {transform_indices = @transform_1, window_bounds = array<i64: 8, 1>}, {transform_indices = @transform_2, window_bounds = array<i64: 1, 1, 1>}]} {
    %c0_i32 = arith.constant 0 : i32
    %0 = arith.cmpi eq, %arg1, %c0_i32 : i32
    %1 = arith.extui %0 : i1 to i32
    %c0_i32_0 = arith.constant 0 : i32
    %2 = arith.cmpi ne, %1, %c0_i32_0 : i32
    scf.if %2 {
      %cst_26 = arith.constant 0.000000e+00 : f32
      %70 = vector.broadcast %cst_26 : f32 to vector<1x1x1xf32>
      %c0_27 = arith.constant 0 : index
      %c0_28 = arith.constant 0 : index
      %c0_29 = arith.constant 0 : index
      %71 = vector.load %arg4[%c0_27, %c0_28, %c0_29] : memref<1x1x1xf32, #tpu.memory_space<vmem>>, vector<1x1x1xf32>
      tpu.vector_store %arg4[%c0_27, %c0_28, %c0_29], %70 {strides = array<i32>} : memref<1x1x1xf32, #tpu.memory_space<vmem>>, vector<1x1x1xf32>,
    } else {
    }
    %c0 = arith.constant 0 : index
    %c0_1 = arith.constant 0 : index
    %3 = vector.load %arg2[%c0, %c0_1] : memref<8x33xf32, #tpu.memory_space<vmem>>, vector<8x33xf32>
    %c0_2 = arith.constant 0 : index
    %c0_3 = arith.constant 0 : index
    %4 = vector.load %arg3[%c0_2, %c0_3] : memref<8x1xi32, #tpu.memory_space<vmem>>, vector<8x1xi32>
    %5 = tpu.iota {dimensions = array<i32: 1>} : vector<1x33xi32>
    %6 = vector.broadcast %5 : vector<1x33xi32> to vector<8x33xi32>
    %7 = vector.broadcast %4 : vector<8x1xi32> to vector<8x33xi32>
    %8 = arith.cmpi eq, %6, %7 : vector<8x33xi32>
    %c32_i32 = arith.constant 32 : i32
    %9 = vector.broadcast %c32_i32 : i32 to vector<1x33xi32>
    %10 = arith.cmpi slt, %5, %9 : vector<1x33xi32>
    %cst = arith.constant -1.000000e+30 : f32
    %11 = vector.shape_cast %10 : vector<1x33xi1> to vector<1x33xi1>
    %12 = vector.broadcast %11 : vector<1x33xi1> to vector<8x33xi1>
    %13 = vector.broadcast %cst : f32 to vector<8x33xf32>
    %14 = arith.select %12, %3, %13 : vector<8x33xi1>, vector<8x33xf32>
    %cst_4 = arith.constant dense<0xFF800000> : vector<8xf32>
    %15 = vector.multi_reduction <maximumf>, %14, %cst_4 [1] : vector<8x33xf32> to vector<8xf32>
    %16 = vector.shape_cast %15 : vector<8xf32> to vector<8x1xf32>
    %17 = vector.broadcast %16 : vector<8x1xf32> to vector<8x33xf32>
    %18 = arith.subf %14, %17 : vector<8x33xf32>
    %19 = math.exp %18 : vector<8x33xf32>
    %cst_5 = arith.constant dense<0.000000e+00> : vector<8xf32>
    %20 = vector.multi_reduction <add>, %19, %cst_5 [1] : vector<8x33xf32> to vector<8xf32>
    %21 = vector.shape_cast %20 : vector<8xf32> to vector<8x1xf32>
    %cst_6 = arith.constant 0.000000e+00 : f32
    %22 = vector.broadcast %cst_6 : f32 to vector<8x33xf32>
    %23 = arith.select %8, %14, %22 : vector<8x33xi1>, vector<8x33xf32>
    %cst_7 = arith.constant dense<0.000000e+00> : vector<8xf32>
    %24 = vector.multi_reduction <add>, %23, %cst_7 [1] : vector<8x33xf32> to vector<8xf32>
    %25 = vector.shape_cast %24 : vector<8xf32> to vector<8x1xf32>
    %26 = math.log %21 : vector<8x1xf32>
    %27 = arith.addf %16, %26 : vector<8x1xf32>
    %28 = arith.subf %27, %25 : vector<8x1xf32>
    %cst_8 = arith.constant 1.000000e+00 : f32
    %29 = vector.broadcast %cst_8 : f32 to vector<8x1xf32>
    %30 = arith.divf %29, %21 : vector<8x1xf32>
    %31 = vector.broadcast %30 : vector<8x1xf32> to vector<8x33xf32>
    %32 = arith.mulf %19, %31 : vector<8x33xf32>
    %cst_9 = arith.constant 1.000000e-07 : f32
    %33 = vector.broadcast %cst_9 : f32 to vector<8x33xf32>
    %34 = arith.maximumf %32, %33 : vector<8x33xf32>
    %cst_10 = arith.constant dense<0.000000e+00> : vector<8xf32>
    %35 = vector.multi_reduction <add>, %34, %cst_10 [1] : vector<8x33xf32> to vector<8xf32>
    %36 = vector.shape_cast %35 : vector<8xf32> to vector<8x1xf32>
    %cst_11 = arith.constant 1.000000e-07 : f32
    %37 = vector.broadcast %cst_11 : f32 to vector<8x1xf32>
    %38 = arith.subf %36, %37 : vector<8x1xf32>
    %39 = arith.subf %25, %16 : vector<8x1xf32>
    %40 = math.exp %39 : vector<8x1xf32>
    %41 = arith.mulf %40, %30 : vector<8x1xf32>
    %cst_12 = arith.constant 1.000000e-07 : f32
    %42 = vector.broadcast %cst_12 : f32 to vector<8x1xf32>
    %43 = arith.maximumf %41, %42 : vector<8x1xf32>
    %44 = arith.subf %38, %43 : vector<8x1xf32>
    %cst_13 = arith.constant 9.21034049 : f32
    %45 = vector.broadcast %cst_13 : f32 to vector<8x1xf32>
    %46 = arith.mulf %45, %44 : vector<8x1xf32>
    %47 = tpu.iota {dimensions = array<i32: 0>} : vector<8x1xi32>
    %c8_i32 = arith.constant 8 : i32
    %48 = arith.muli %arg0, %c8_i32 : i32
    %c8_i32_14 = arith.constant 8 : i32
    %49 = arith.muli %arg1, %c8_i32_14 : i32
    %50 = arith.addi %48, %49 : i32
    %51 = vector.broadcast %50 : i32 to vector<8x1xi32>
    %52 = arith.addi %51, %47 : vector<8x1xi32>
    %c8_i32_15 = arith.constant 8 : i32
    %53 = vector.broadcast %c8_i32_15 : i32 to vector<8x1xi32>
    %54 = arith.cmpi slt, %52, %53 : vector<8x1xi32>
    %cst_16 = arith.constant 1.000000e+00 : f32
    %55 = vector.broadcast %cst_16 : f32 to vector<8x1xf32>
    %56 = arith.mulf %55, %28 : vector<8x1xf32>
    %cst_17 = arith.constant 1.000000e+00 : f32
    %57 = vector.broadcast %cst_17 : f32 to vector<8x1xf32>
    %58 = arith.mulf %57, %46 : vector<8x1xf32>
    %59 = arith.addf %56, %58 : vector<8x1xf32>
    %cst_18 = arith.constant 0.000000e+00 : f32
    %60 = vector.broadcast %cst_18 : f32 to vector<8x1xf32>
    %61 = arith.select %54, %59, %60 : vector<8x1xi1>, vector<8x1xf32>
    %c0_19 = arith.constant 0 : index
    %c0_20 = arith.constant 0 : index
    %c0_21 = arith.constant 0 : index
    %62 = vector.load %arg4[%c0_19, %c0_20, %c0_21] : memref<1x1x1xf32, #tpu.memory_space<vmem>>, vector<1x1x1xf32>
    %63 = vector.shape_cast %61 : vector<8x1xf32> to vector<1x8x1xf32>
    %cst_22 = arith.constant dense<0.000000e+00> : vector<1xf32>
    %64 = vector.multi_reduction <add>, %63, %cst_22 [1, 2] : vector<1x8x1xf32> to vector<1xf32>
    %65 = vector.shape_cast %64 : vector<1xf32> to vector<1x1x1xf32>
    %66 = vector.extract %65[0, 0, 0] : f32 from vector<1x1x1xf32>
    %67 = vector.broadcast %66 : f32 to vector<1x1x1xf32>
    %68 = arith.addf %62, %67 : vector<1x1x1xf32>
    %c0_23 = arith.constant 0 : index
    %c0_24 = arith.constant 0 : index
    %c0_25 = arith.constant 0 : index
    %69 = vector.load %arg4[%c0_23, %c0_24, %c0_25] : memref<1x1x1xf32, #tpu.memory_space<vmem>>, vector<1x1x1xf32>
    tpu.vector_store %arg4[%c0_23, %c0_24, %c0_25], %68 {strides = array<i32>} : memref<1x1x1xf32, #tpu.memory_space<vmem>>, vector<1x1x1xf32>,
    return
  }
  func.func @transform_0(%arg0: i32, %arg1: i32) -> (i32, i32) {
    %c1_i32 = arith.constant 1 : i32
    %0 = arith.muli %arg0, %c1_i32 : i32
    %1 = arith.addi %0, %arg1 : i32
    %c0_i32 = arith.constant 0 : i32
    %2 = arith.minsi %1, %c0_i32 : i32
    %c0_i32_0 = arith.constant 0 : i32
    %c0_i32_1 = arith.constant 0 : i32
    return %2, %c0_i32_0 : i32, i32
  }
  func.func @transform_1(%arg0: i32, %arg1: i32) -> (i32, i32) {
    %c1_i32 = arith.constant 1 : i32
    %0 = arith.muli %arg0, %c1_i32 : i32
    %1 = arith.addi %0, %arg1 : i32
    %c0_i32 = arith.constant 0 : i32
    %2 = arith.minsi %1, %c0_i32 : i32
    %c0_i32_0 = arith.constant 0 : i32
    %c0_i32_1 = arith.constant 0 : i32
    return %2, %c0_i32_0 : i32, i32
  }
  func.func @transform_2(%arg0: i32, %arg1: i32) -> (i32, i32, i32) {
    %c0_i32 = arith.constant 0 : i32
    %c0_i32_0 = arith.constant 0 : i32
    %c0_i32_1 = arith.constant 0 : i32
    return %arg0, %c0_i32, %c0_i32_0 : i32, i32, i32
  }
}

</mosaic_0001>

<llo_original>
// kernel: tpu_custom_call.1
$region0: #{tpu_custom_call.1}
  #allocation0 [shape = 'u32[]', space=smem, size = 0x4, offset = 0x4, fixed_abs, tag = 'smem constant byte address 0x4 - core index']
  #allocation1 [shape = 'u32[72,128]{1,0:T(1,128)}', space=vmem, size = 0x9000, scoped, tag = 'internal scratch']
  %s0 = inlined_call_operand.vmem [shape: f32[8,33], index: 0, kind: input, shape index: {}]
  %s1 = inlined_call_operand.vmem [shape: s32[8,1], index: 1, kind: input, shape index: {}]
  %s2 = inlined_call_operand.hbm [shape: f32[1,1,1], index: 2, kind: output, shape index: {}]
  %s3 = sld [smem:[#allocation0]]
  $region22: #{tpu_custom_call.1} parent=0
    _
  %s5 = ssub.s32 1, %s3
  %s6 = scalar_select 0, %s5, %s3
  $region1: #{tpu_custom_call.1} parent=0
    #allocation2 [shape = 'u8[512]{0}', space=vmem, size = 0x400, scoped, tag = 'output window, operand 0, single buffered']
    #allocation3 [shape = 's32[1]{0}', space=sflag, size = 0x4, scoped, tag = 'scoped memory for tpu_custom_call.1']
    %7 = vsyncpa [#allocation3], 0
    // Predicated region
    $region2: #{tpu_custom_call.1} parent=1 // pred_check
      _
    $region3: #{tpu_custom_call.1} parent=1 // pred_check_branch
      %9 = sbr.rel (0) target = $region5
    $region4: #{tpu_custom_call.1} parent=1 // pred_region
      %s10 = sadd.s32 0, 0
      %p11 = scmp.lt.s32.totalorder %s10, 0
      %s12 = scalar_select %p11, %s10, 0
      %p13 = scmp.lt.s32.totalorder %s12, 0
      %s14 = scalar_select %p13, %s12, 0
      %s15 = smul.addr %s14, 8
      %s16 = scalar_lea.vmem %s0, %s15
      %s17 = sadd.s32 0, 0
      %p18 = scmp.lt.s32.totalorder %s17, 0
      %s19 = scalar_select %p18, %s17, 0
    $region5: #{tpu_custom_call.1} parent=1 // pred_fallthru
      _
    // Predicated region
    $region6: #{tpu_custom_call.1} parent=1 // pred_check
      _
    $region7: #{tpu_custom_call.1} parent=1 // pred_check_branch
      %21 = sbr.rel (0) target = $region9
    $region8: #{tpu_custom_call.1} parent=1 // pred_region
      %s22 = sadd.s32 0, 0
      %p23 = scmp.lt.s32.totalorder %s22, 0
      %s24 = scalar_select %p23, %s22, 0
      %p25 = scmp.lt.s32.totalorder %s24, 0
      %s26 = scalar_select %p25, %s24, 0
      %s27 = smul.addr %s26, 8
      %s28 = scalar_lea.vmem %s1, %s27
      %s29 = sadd.s32 0, 0
      %p30 = scmp.lt.s32.totalorder %s29, 0
      %s31 = scalar_select %p30, %s29, 0
    $region9: #{tpu_custom_call.1} parent=1 // pred_fallthru
      _
    %s32 = sadd.s32 0, 0
    %p33 = scmp.lt.s32.totalorder %s32, 0
    %s34 = scalar_select %p33, %s32, 0
    %p35 = scmp.lt.s32.totalorder %s34, 0
    %s36 = scalar_select %p35, %s34, 0
    %s37 = smul.addr %s36, 8
    %s38 = scalar_lea.vmem %s0, %s37
    %s39 = sadd.s32 0, 0
    %p40 = scmp.lt.s32.totalorder %s39, 0
    %s41 = scalar_select %p40, %s39, 0
    %p42 = scmp.lt.s32.totalorder %s41, 0
    %s43 = scalar_select %p42, %s41, 0
    %s44 = smul.addr %s43, 8
    %s45 = scalar_lea.vmem %s1, %s44
    %s46 = sadd.s32 0, 0
    %p47 = scmp.lt.s32.totalorder %s46, 0
    %s48 = scalar_select %p47, %s46, 0
    %p49 = scmp.lt.s32.totalorder %s48, 0
    %s50 = scalar_select %p49, %s48, 0
    %s51 = smul.addr %s50, 8
    %s52 = scalar_lea.vmem %s0, %s51
    %s53 = sadd.s32 0, 0
    %p54 = scmp.lt.s32.totalorder %s53, 0
    %s55 = scalar_select %p54, %s53, 0
    %s56 = sadd.s32 0, 0
    %p57 = scmp.lt.s32.totalorder %s56, 0
    %s58 = scalar_select %p57, %s56, 0
    %p59 = scmp.lt.s32.totalorder %s58, 0
    %s60 = scalar_select %p59, %s58, 0
    %s61 = smul.addr %s60, 8
    %s62 = scalar_lea.vmem %s1, %s61
    %s63 = sadd.s32 0, 0
    %p64 = scmp.lt.s32.totalorder %s63, 0
    %s65 = scalar_select %p64, %s63, 0
    %p66 = scmp.eq.s32.totalorder 0, 0
    // Predicated region
    $region10: #{tpu_custom_call.1} parent=1 // pred_check
      %p67 = pneg %p66
    $region11: #{tpu_custom_call.1} parent=1 // pred_check_branch
      %69 = sbr.rel (%p67) target = $region13
    $region12: #{tpu_custom_call.1} parent=1 // pred_region
      %vm70 = vcmask 0
      %71 = vst.msk [vmem:[#allocation2] sm:$0x1] %vm70, 0.0
    $region13: #{tpu_custom_call.1} parent=1 // pred_fallthru
      _
    %v72 = vld [vmem:[%s52] sm:$0xff]
    %v73 = vld [vmem:[%s62] sm:$0xff]
    %v74 = vlaneseq
    %v75 = vand.u32 %v74, 127
    %76 = vset.pattern.permute.xlu0 0
    %77 = vperm.xlu0 %76, %v73
    %v78 = vpop.permute.xlu0 %77
    %vm79 = vcmp.eq.s32.totalorder %v75, %v78
    %vm80 = vcmp.lt.s32.totalorder %v75, 32
    %v81 = vsel %vm80, 1, 0
    %vm82 = vcmp.eq.s32.totalorder %v81, 1
    %v83 = vsel %vm82, %v72, -1e+30
    %vm84 = vcmask 269312
    %v85 = vsel %vm84, %v83, -inf
    %86 = vmax.xlane.f32.xlu0 %v85
    %v87 = vpop.xlane.xlu0 %86
    %v88 = vsub.f32 %v83, %v87
    %v89 = vmul.f32 %v88, 1.442695
    %v90 = vpow.pop %v89
    %v91 = vsel %vm84, %v90, 0.0
    %92 = vadd.xlane.f32.xlu0 %v91
    %v93 = vpop.xlane.xlu0 %92
    %v94 = vsel %vm79, %v83, 0.0
    %v95 = vsel %vm84, %v94, 0.0
    %96 = vadd.xlane.f32.xlu0 %v95
    %v97 = vpop.xlane.xlu0 %96
    %v98 = vlog2.pop %v93
    %v99 = vmul.f32 %v98, 0.6931472
    %v100 = vadd.f32 %v87, %v99
    %v101 = vsub.f32 %v100, %v97
    %v102 = vrcp.pop %v93
    %v103 = vmul.f32 %v93, %v102
    %v104 = vsub.f32 1.0, %v103
    %v105 = vmul.f32 %v102, %v104
    %v106 = vadd.f32 %v102, %v105
    %vm107 = vweird.f32 %v93
    %vm108 = vweird.f32 %v102
    %vm109 = vmor %vm107, %vm108
    %v110 = vsel %vm109, %v102, %v106
    %v111 = vand.u32 2147483647, %v93
    %vm112 = vcmp.eq.f32.partialorder %v111, 8.507059e+37
    %v113 = vand.u32 %v93, 2147483648
    %v114 = vor.u32 1.1754944e-38, %v113
    %v115 = vsel %vm112, %v114, %v110
    %v116 = vmul.f32 1.0, %v115
    %v117 = vmul.f32 %v90, %v116
    %v118 = vmax.f32 %v117, 1e-07
    %v119 = vsel %vm84, %v118, 0.0
    %120 = vadd.xlane.f32.xlu0 %v119
    %v121 = vpop.xlane.xlu0 %120
    %v122 = vsub.f32 %v121, 1e-07
    %v123 = vsub.f32 %v97, %v87
    %v124 = vmul.f32 %v123, 1.442695
    %v125 = vpow.pop %v124
    %v126 = vmul.f32 %v125, %v116
    %v127 = vmax.f32 %v126, 1e-07
    %v128 = vsub.f32 %v122, %v127
    %v129 = vmul.f32 %v128, 9.2103405
    %v130 = vlaneseq
    %v131 = vshrl.u32 %v130, 7
    %s132 = smul.u32 0, 8
    %s133 = smul.u32 0, 8
    %s134 = sadd.s32 %s132, %s133
    %v135 = vstv %s134
    %v136 = vadd.s32 %v135, %v131
    %vm137 = vcmp.lt.s32.totalorder %v136, 8
    %v138 = vadd.f32 %v101, %v129
    %v139 = vsel %vm137, %v138, 0.0
    %v140 = vld [vmem:[#allocation2] sm:$0x1]
    %vm141 = vcmask 7168
    %v142 = vsel %vm141, %v139, 0.0
    %143 = vadd.xlane.f32.xlu0 %v142
    %v144 = vpop.xlane.xlu0 %143
    %v145 = vrot.slane %v144, 4
    %v146 = vadd.f32 %v144, %v145
    %v147 = vrot.slane %v146, 2
    %v148 = vadd.f32 %v146, %v147
    %v149 = vrot.slane %v148, 1
    %v150 = vadd.f32 %v148, %v149
    %s151 = vtos %v150
    %v152 = vstv %s151
    %v153 = vadd.f32 %v140, %v152
    %vm154 = vcmask 0
    %155 = vst.msk [vmem:[#allocation2] sm:$0x1] %vm154, %v153
    // Predicated region
    $region14: #{tpu_custom_call.1} parent=1 // pred_check
      _
    $region15: #{tpu_custom_call.1} parent=1 // pred_check_branch
      %157 = sbr.rel (0) target = $region17
    $region16: #{tpu_custom_call.1} parent=1 // pred_region
      %159 = vsyncadd [#allocation3], 0
      %s161 = sshll.u32 [#allocation2], 4
      %s162 = int_to_ptr.vmem [resolvable:$true] %s161
      %s163 = sshll.u32 %s2, 4
      %s164 = int_to_ptr.hbm [resolvable:$true] %s163
      %166 = dma.vmem_to_hbm [thread:$0]  %s162, 16, %s164, [#allocation3]
    $region17: #{tpu_custom_call.1} parent=1 // pred_fallthru
      _
    // Predicated region
    $region18: #{tpu_custom_call.1} parent=1 // pred_check
      _
    $region19: #{tpu_custom_call.1} parent=1 // pred_check_branch
      %168 = sbr.rel (0) target = $region21
    $region20: #{tpu_custom_call.1} parent=1 // pred_region
      %170 = dma.done [#allocation3], 16
    $region21: #{tpu_custom_call.1} parent=1 // pred_fallthru
      _
    %171 = vsyncpa [#allocation3], 1

</llo_original>
